<compile_context>
chip_gen: v5e
topology: v5e:2x2
jax: 0.10.0
libtpu: 0.0.40
codegen_flags: <defaults>
</compile_context>

<pallas_src>
import functools

import jax
import jax.numpy as jnp
from jax import lax
from jax.experimental import pallas as pl
from jax.experimental.pallas import tpu as pltpu

BN_EPS = 1e-5


# --------------------------------------------------------------------------
# Kernels
# --------------------------------------------------------------------------
def _dwconv_relu_bn_kernel_ncl(x_ref, w_ref, o_ref):
    """Native-layout kernel.

    x_ref: (B, tc, L)  -- L on lanes, channel tile on sublanes.
    w_ref: (tc, 3)     -- per-channel depthwise taps.
    o_ref: (B, tc, L)  -- same layout as x_ref.
    """
    x = x_ref[...].astype(jnp.float32)
    b, tc, L = x.shape
    w = w_ref[...].astype(jnp.float32).reshape(1, tc, 3)

    # Boundary masks depend only on the lane (L) index: one row of work,
    # no modulo needed in the native layout.
    lpos = lax.broadcasted_iota(jnp.int32, (1, 1, L), 2)
    left_m = (lpos > 0).astype(jnp.float32)        # zero-pad at l == 0
    right_m = (lpos < L - 1).astype(jnp.float32)   # zero-pad at l == L-1

    # k=3 depthwise conv via lane rotations (XLU slot) + multiplicative masks,
    # accumulated in place (few concurrently-live full-block temporaries).
    y = x * w[:, :, 1:2]
    y = y + (pltpu.roll(x, 1, axis=2) * left_m) * w[:, :, 0:1]
    y = y + (pltpu.roll(x, L - 1, axis=2) * right_m) * w[:, :, 2:3]

    # nn.ReLU (the module names it gelu1 but it is a ReLU).
    y = jnp.maximum(y, 0.0)

    # BatchNorm1d, training mode, identity affine.  Per-channel stats over
    # (B, L); centered two-pass variance for numerical robustness.
    cnt = jnp.float32(b * L)
    mean = jnp.sum(jnp.sum(y, axis=2, keepdims=True), axis=0, keepdims=True) / cnt
    d = y - mean
    var = jnp.sum(jnp.sum(d * d, axis=2, keepdims=True), axis=0, keepdims=True) / cnt
    o_ref[...] = (d * lax.rsqrt(var + BN_EPS)).astype(o_ref.dtype)


def _dwconv_relu_bn_kernel_flat(x_ref, w_ref, o_ref, *, seq_len):
    """Lane-dense fallback kernel for small / non-128-aligned L.

    x_ref: (tc, N) with N = B*L flattened on lanes (channel tile on sublanes).
    w_ref: (tc, 3).
    o_ref: (tc, N).
    """
    x = x_ref[...].astype(jnp.float32)
    tc, n = x.shape
    w = w_ref[...].astype(jnp.float32)

    # Single-row iota -> boundary masks (modulo over 1 row, not tc rows).
    lpos = lax.broadcasted_iota(jnp.int32, (1, n), 1) % seq_len
    left_m = (lpos > 0).astype(jnp.float32)
    right_m = (lpos < seq_len - 1).astype(jnp.float32)

    y = x * w[:, 1:2]
    y = y + (pltpu.roll(x, 1, axis=1) * left_m) * w[:, 0:1]
    y = y + (pltpu.roll(x, n - 1, axis=1) * right_m) * w[:, 2:3]
    y = jnp.maximum(y, 0.0)

    cnt = jnp.float32(n)
    mean = jnp.sum(y, axis=1, keepdims=True) / cnt
    d = y - mean
    var = jnp.sum(d * d, axis=1, keepdims=True) / cnt
    o_ref[...] = (d * lax.rsqrt(var + BN_EPS)).astype(o_ref.dtype)


# --------------------------------------------------------------------------
# Tiling / wrapper
# --------------------------------------------------------------------------
def _vmem_capacity_bytes():
    try:
        return int(pltpu.get_tpu_info().vmem_capacity_bytes)
    except Exception:
        return 64 * 1024 * 1024      # conservative default (v7x per-TC VMEM)


def _pick_channel_tile(C, bytes_per_channel_row, budget_bytes,
                       min_steps=4, row_align=8):
    """Channel tile tc (divides C, multiple of row_align) whose per-block VMEM
    footprint fits the budget, preferring an even grid of >= min_steps steps
    (DMA/compute overlap + v7x dual-TensorCore sharding) over the largest tile."""
    if C % row_align != 0:
        return C                      # small / odd channel counts: one block
    cands = [t for t in range(row_align, C + 1, row_align) if C % t == 0]
    fitting = [t for t in cands if t * bytes_per_channel_row <= budget_bytes]
    if not fitting:
        # TODO(synk): add a lane-axis (B*L) tiled two-pass BN fallback (grid
        # reduction with sum/sumsq scratch + explicit halos) for very large
        # B*L on 64 MiB-VMEM parts; smallest channel tile is best effort here.
        return row_align
    for pred in (lambda t: C // t >= min_steps and (C // t) % 2 == 0,
                 lambda t: C // t >= min_steps,
                 lambda t: True):
        sel = [t for t in fitting if pred(t)]
        if sel:
            return max(sel)
    return row_align


def dwconv_relu_bn(x, weight, in_channels, out_channels, stride=1):
    """x: (B, in_channels, L); weight: (out_channels, 1, 3).
    Returns (B, out_channels, L) in x's (float) dtype, PyTorch NCL layout."""
    assert stride == 1, "only stride=1 (the module default) is implemented"
    B, Cin, L = x.shape
    assert Cin == in_channels and out_channels % in_channels == 0
    k = out_channels // in_channels
    if k > 1:
        # TODO(synk): fold the grouped k-fold channel expansion into the kernel;
        # every DWCONV inside MyFormerBlock uses out_channels == in_channels,
        # so this host-side repeat never fires in practice.
        x = jnp.repeat(x, k, axis=1)
    C = out_channels

    io_dtype = jnp.bfloat16 if x.dtype == jnp.bfloat16 else jnp.float32
    io_bytes = 2 if io_dtype == jnp.bfloat16 else 4
    row_align = 16 if io_dtype == jnp.bfloat16 else 8
    x = x.astype(io_dtype)
    w2 = weight.reshape(C, 3).astype(jnp.float32)

    cap = _vmem_capacity_bytes()
    vmem_limit = min(cap * 3 // 4, 96 * 1024 * 1024)
    tile_budget = min(vmem_limit * 3 // 4, 40 * 1024 * 1024)
    # Per-channel-row footprint: double-buffered in + out, plus ~5 live f32
    # temps (x, y, rolled/masked products) materialized in VMEM.
    bytes_per_row = B * L * (4 * io_bytes + 20)
    tc = _pick_channel_tile(C, bytes_per_row, tile_budget, row_align=row_align)
    grid = (C // tc,)
    cparams = pltpu.CompilerParams(dimension_semantics=("parallel",),
                                   vmem_limit_bytes=vmem_limit)

    if L % 128 == 0:
        # Main path: native (B, C, L), no host-side relayout at all.
        return pl.pallas_call(
            _dwconv_relu_bn_kernel_ncl,
            out_shape=jax.ShapeDtypeStruct((B, C, L), io_dtype),
            grid=grid,
            in_specs=[
                pl.BlockSpec((B, tc, L), lambda i: (0, i, 0)),
                pl.BlockSpec((tc, 3), lambda i: (i, 0)),
            ],
            out_specs=pl.BlockSpec((B, tc, L), lambda i: (0, i, 0)),
            compiler_params=cparams,
        )(x, w2)

    # Fallback for small / non-128-aligned L: flatten (B, L) onto the lane
    # axis so the stores stay lane-dense (full-width vst, not vst.msk).
    N = B * L
    x2d = jnp.transpose(x, (1, 0, 2)).reshape(C, N)
    out2d = pl.pallas_call(
        functools.partial(_dwconv_relu_bn_kernel_flat, seq_len=L),
        out_shape=jax.ShapeDtypeStruct((C, N), io_dtype),
        grid=grid,
        in_specs=[
            pl.BlockSpec((tc, N), lambda i: (i, 0)),
            pl.BlockSpec((tc, 3), lambda i: (i, 0)),
        ],
        out_specs=pl.BlockSpec((tc, N), lambda i: (i, 0)),
        compiler_params=cparams,
    )(x2d, w2)
    return jnp.transpose(out2d.reshape(C, B, L), (1, 0, 2))


# --------------------------------------------------------------------------
# Pure-JAX reference (independent check of the same forward semantics)
# --------------------------------------------------------------------------
def _reference(x, weight, in_channels, out_channels):
    k = out_channels // in_channels
    xe = jnp.repeat(x, k, axis=1) if k > 1 else x
    xp = jnp.pad(xe, ((0, 0), (0, 0), (1, 1)))
    w = weight.reshape(out_channels, 3)
    L = x.shape[-1]
    y = (xp[:, :, 0:L] * w[None, :, 0:1]
         + xp[:, :, 1:L + 1] * w[None, :, 1:2]
         + xp[:, :, 2:L + 2] * w[None, :, 2:3])
    y = jnp.maximum(y, 0.0)
    mean = jnp.mean(y, axis=(0, 2), keepdims=True)
    var = jnp.mean((y - mean) ** 2, axis=(0, 2), keepdims=True)
    return (y - mean) / jnp.sqrt(var + BN_EPS)


if __name__ == "__main__":
    key = jax.random.PRNGKey(0)
    kx1, kw1, kx2, kw2 = jax.random.split(key, 4)
    bound = 1.0 / jnp.sqrt(3.0)   # stand-in for Conv1d default uniform init

    # Case 1: lane-aligned L -> native (B, C, L) path, multi-step grid.
    B, C, L = 2, 32, 128
    x1 = jax.random.normal(kx1, (B, C, L), dtype=jnp.float32)
    w1 = jax.random.uniform(kw1, (C, 1, 3), jnp.float32, -bound, bound)
    out1 = dwconv_relu_bn(x1, w1, C, C)
    jax.block_until_ready(out1)
    ref1 = _reference(x1, w1, C, C)
    assert out1.shape == (B, C, L)
    assert jnp.allclose(out1, ref1, atol=1e-4, rtol=1e-4)

    # Case 2: small, non-128-aligned L -> lane-dense flattened fallback path.
    B2, C2, L2 = 2, 16, 64
    x2 = jax.random.normal(kx2, (B2, C2, L2), dtype=jnp.float32)
    w2 = jax.random.uniform(kw2, (C2, 1, 3), jnp.float32, -bound, bound)
    out2 = dwconv_relu_bn(x2, w2, C2, C2)
    jax.block_until_ready(out2)
    ref2 = _reference(x2, w2, C2, C2)
    assert out2.shape == (B2, C2, L2)
    assert jnp.allclose(out2, ref2, atol=1e-4, rtol=1e-4)

    print("KERNEL_OK")
</pallas_src>

<mosaic_0001>
module attributes {stable_mosaic.version = 11 : i64} {
  func.func @_dwconv_relu_bn_kernel_ncl(%arg0: i32, %arg1: memref<2x8x128xf32, #tpu.memory_space<vmem>>, %arg2: memref<8x3xf32, #tpu.memory_space<vmem>>, %arg3: memref<2x8x128xf32, #tpu.memory_space<vmem>>) attributes {dimension_semantics = [#tpu.dimension_semantics<parallel>], iteration_bounds = array<i64: 4>, scalar_prefetch = 0 : i64, scratch_operands = 0 : i64, tpu.core_type = #tpu.core_type<tc>, window_params = [{transform_indices = @transform_0, window_bounds = array<i64: 2, 8, 128>}, {transform_indices = @transform_1, window_bounds = array<i64: 8, 3>}, {transform_indices = @transform_2, window_bounds = array<i64: 2, 8, 128>}]} {
    %c0 = arith.constant 0 : index
    %c0_0 = arith.constant 0 : index
    %c0_1 = arith.constant 0 : index
    %0 = vector.load %arg1[%c0, %c0_0, %c0_1] : memref<2x8x128xf32, #tpu.memory_space<vmem>>, vector<2x8x128xf32>
    %c0_2 = arith.constant 0 : index
    %c0_3 = arith.constant 0 : index
    %1 = vector.load %arg2[%c0_2, %c0_3] : memref<8x3xf32, #tpu.memory_space<vmem>>, vector<8x3xf32>
    %2 = vector.shape_cast %1 : vector<8x3xf32> to vector<1x8x3xf32>
    %3 = tpu.iota {dimensions = array<i32: 2>} : vector<1x1x128xi32>
    %c0_i32 = arith.constant 0 : i32
    %4 = vector.broadcast %c0_i32 : i32 to vector<1x1x128xi32>
    %5 = arith.cmpi sgt, %3, %4 : vector<1x1x128xi32>
    %6 = arith.extui %5 : vector<1x1x128xi1> to vector<1x1x128xi32>
    %7 = arith.sitofp %6 : vector<1x1x128xi32> to vector<1x1x128xf32>
    %c127_i32 = arith.constant 127 : i32
    %8 = vector.broadcast %c127_i32 : i32 to vector<1x1x128xi32>
    %9 = arith.cmpi slt, %3, %8 : vector<1x1x128xi32>
    %10 = arith.extui %9 : vector<1x1x128xi1> to vector<1x1x128xi32>
    %11 = arith.sitofp %10 : vector<1x1x128xi32> to vector<1x1x128xf32>
    %12 = vector.extract_strided_slice %2 {offsets = [0, 0, 1], sizes = [1, 8, 1], strides = [1, 1, 1]} : vector<1x8x3xf32> to vector<1x8x1xf32>
    %13 = vector.broadcast %12 : vector<1x8x1xf32> to vector<2x8x128xf32>
    %14 = arith.mulf %0, %13 : vector<2x8x128xf32>
    %c1_i32 = arith.constant 1 : i32
    %15 = tpu.dynamic_rotate %0 by %c1_i32 dim 2 : vector<2x8x128xf32>, i32 -> vector<2x8x128xf32>
    %16 = vector.broadcast %7 : vector<1x1x128xf32> to vector<2x8x128xf32>
    %17 = arith.mulf %15, %16 : vector<2x8x128xf32>
    %18 = vector.extract_strided_slice %2 {offsets = [0, 0, 0], sizes = [1, 8, 1], strides = [1, 1, 1]} : vector<1x8x3xf32> to vector<1x8x1xf32>
    %19 = vector.broadcast %18 : vector<1x8x1xf32> to vector<2x8x128xf32>
    %20 = arith.mulf %17, %19 : vector<2x8x128xf32>
    %21 = arith.addf %14, %20 : vector<2x8x128xf32>
    %c127_i32_4 = arith.constant 127 : i32
    %22 = tpu.dynamic_rotate %0 by %c127_i32_4 dim 2 : vector<2x8x128xf32>, i32 -> vector<2x8x128xf32>
    %23 = vector.broadcast %11 : vector<1x1x128xf32> to vector<2x8x128xf32>
    %24 = arith.mulf %22, %23 : vector<2x8x128xf32>
    %25 = vector.extract_strided_slice %2 {offsets = [0, 0, 2], sizes = [1, 8, 1], strides = [1, 1, 1]} : vector<1x8x3xf32> to vector<1x8x1xf32>
    %26 = vector.broadcast %25 : vector<1x8x1xf32> to vector<2x8x128xf32>
    %27 = arith.mulf %24, %26 : vector<2x8x128xf32>
    %28 = arith.addf %21, %27 : vector<2x8x128xf32>
    %cst = arith.constant 0.000000e+00 : f32
    %29 = vector.broadcast %cst : f32 to vector<2x8x128xf32>
    %30 = arith.maximumf %28, %29 : vector<2x8x128xf32>
    %cst_5 = arith.constant dense<0.000000e+00> : vector<2x8xf32>
    %31 = vector.multi_reduction <add>, %30, %cst_5 [2] : vector<2x8x128xf32> to vector<2x8xf32>
    %32 = vector.shape_cast %31 : vector<2x8xf32> to vector<2x8x1xf32>
    %cst_6 = arith.constant dense<0.000000e+00> : vector<8x1xf32>
    %33 = vector.multi_reduction <add>, %32, %cst_6 [0] : vector<2x8x1xf32> to vector<8x1xf32>
    %34 = vector.shape_cast %33 : vector<8x1xf32> to vector<1x8x1xf32>
    %cst_7 = arith.constant 2.560000e+02 : f32
    %35 = vector.broadcast %cst_7 : f32 to vector<1x8x1xf32>
    %36 = arith.divf %34, %35 : vector<1x8x1xf32>
    %37 = vector.broadcast %36 : vector<1x8x1xf32> to vector<2x8x128xf32>
    %38 = arith.subf %30, %37 : vector<2x8x128xf32>
    %39 = arith.mulf %38, %38 : vector<2x8x128xf32>
    %cst_8 = arith.constant dense<0.000000e+00> : vector<2x8xf32>
    %40 = vector.multi_reduction <add>, %39, %cst_8 [2] : vector<2x8x128xf32> to vector<2x8xf32>
    %41 = vector.shape_cast %40 : vector<2x8xf32> to vector<2x8x1xf32>
    %cst_9 = arith.constant dense<0.000000e+00> : vector<8x1xf32>
    %42 = vector.multi_reduction <add>, %41, %cst_9 [0] : vector<2x8x1xf32> to vector<8x1xf32>
    %43 = vector.shape_cast %42 : vector<8x1xf32> to vector<1x8x1xf32>
    %cst_10 = arith.constant 2.560000e+02 : f32
    %44 = vector.broadcast %cst_10 : f32 to vector<1x8x1xf32>
    %45 = arith.divf %43, %44 : vector<1x8x1xf32>
    %cst_11 = arith.constant 9.99999974E-6 : f32
    %46 = vector.broadcast %cst_11 : f32 to vector<1x8x1xf32>
    %47 = arith.addf %45, %46 : vector<1x8x1xf32>
    %48 = math.rsqrt %47 : vector<1x8x1xf32>
    %49 = vector.broadcast %48 : vector<1x8x1xf32> to vector<2x8x128xf32>
    %50 = arith.mulf %38, %49 : vector<2x8x128xf32>
    %c0_12 = arith.constant 0 : index
    %c0_13 = arith.constant 0 : index
    %c0_14 = arith.constant 0 : index
    %51 = vector.load %arg3[%c0_12, %c0_13, %c0_14] : memref<2x8x128xf32, #tpu.memory_space<vmem>>, vector<2x8x128xf32>
    tpu.vector_store %arg3[%c0_12, %c0_13, %c0_14], %50 {strides = array<i32>} : memref<2x8x128xf32, #tpu.memory_space<vmem>>, vector<2x8x128xf32>,
    return
  }
  func.func @transform_0(%arg0: i32) -> (i32, i32, i32) {
    %c0_i32 = arith.constant 0 : i32
    %c0_i32_0 = arith.constant 0 : i32
    %c0_i32_1 = arith.constant 0 : i32
    return %c0_i32, %arg0, %c0_i32_0 : i32, i32, i32
  }
  func.func @transform_1(%arg0: i32) -> (i32, i32) {
    %c0_i32 = arith.constant 0 : i32
    %c0_i32_0 = arith.constant 0 : i32
    return %arg0, %c0_i32 : i32, i32
  }
  func.func @transform_2(%arg0: i32) -> (i32, i32, i32) {
    %c0_i32 = arith.constant 0 : i32
    %c0_i32_0 = arith.constant 0 : i32
    %c0_i32_1 = arith.constant 0 : i32
    return %c0_i32, %arg0, %c0_i32_0 : i32, i32, i32
  }
}

</mosaic_0001>

<llo_original>
// kernel: tpu_custom_call.1
$region0: #{tpu_custom_call.1}
  #allocation0 [shape = 'u32[]', space=smem, size = 0x4, offset = 0x4, fixed_abs, tag = 'smem constant byte address 0x4 - core index']
  #allocation1 [shape = 'u32[72,128]{1,0:T(1,128)}', space=vmem, size = 0x9000, scoped, tag = 'internal scratch']
  %s0 = inlined_call_operand.hbm [shape: f32[2,32,128], index: 0, kind: input, shape index: {}]
  %s1 = inlined_call_operand.vmem [shape: f32[32,3], index: 1, kind: input, shape index: {}]
  %s2 = inlined_call_operand.hbm [shape: f32[2,32,128], index: 2, kind: output, shape index: {}]
  %s3 = sld [smem:[#allocation0]]
  $region45: #{tpu_custom_call.1} parent=0
    _
  %s5 = ssub.s32 1, %s3
  %s6 = scalar_select 0, %s5, %s3
  $region1: #{tpu_custom_call.1} parent=0
    #allocation2 [shape = 'u8[16384]{0}', space=vmem, size = 0x4000, scoped, tag = 'input window, operand 0']
    #allocation3 [shape = 's32[2]{0}', space=sflag, size = 0x8, scoped, tag = 'scoped memory for tpu_custom_call.1']
    #allocation4 [shape = 's32[2]{0}', space=sflag, size = 0x8, scoped, tag = 'scoped memory for tpu_custom_call.1']
    #allocation5 [shape = 'u8[16384]{0}', space=vmem, size = 0x4000, scoped, tag = 'output window, operand 0']
    %7 = vsyncpa [#allocation3], 0
    %s8 = scalar_lea.sflag [#allocation3], 1
    %9 = vsyncpa %s8, 0
    %10 = vsyncpa [#allocation4], 0
    %s11 = scalar_lea.sflag [#allocation4], 1
    %12 = vsyncpa %s11, 0
    loop: start=0, step=1, limit=6
    $region2: #{tpu_custom_call.1} parent=1 // loop_pre_header
      _
    $region3: #{tpu_custom_call.1} parent=1 // loop_header
      %s14 = sphi 0, %s18
      %p15 = scmp.ge.s32.totalorder %s14, 6
      %s24 = sphi 0, %s26
      %s27 = sphi 0, %s24
      %s28 = sphi 0, %s27
      %s44 = sphi 0, %s28
      %s50 = sphi 0, %s52
      %s53 = sphi 0, %s50
      %s54 = sphi 0, %s53
      %s70 = sphi 0, %s54
      %s76 = sphi 0, %s78
      %s79 = sphi 0, %s76
      %s80 = sphi 0, %s79
      %s96 = sphi 0, %s80
    $region4: #{tpu_custom_call.1} parent=1 // loop_header_branch
      %17 = sbr.rel (%p15) target = $region8
    $region5: #{tpu_custom_call.1} parent=1 // loop_body
      %s19 = ssub.s32 %s14, 1
      %s20 = ssub.s32 %s14, 2
      %s21 = sadd.s32 %s14, 1
      %s22 = ssub.s32 %s14, %s21
      %p23 = scmp.eq.s32.totalorder %s22, 0
      %s25 = sadd.s32 %s24, 1
      %s26 = scalar_select %p23, %s24, %s25
      %p29 = pneg %p23
      %p30 = scmp.eq.s32.totalorder %s14, 3
      %p31 = por %p29, %p30
      %p32 = scmp.ne.s32.totalorder %s24, %s27
      %p33 = scmp.eq.s32.totalorder %s14, 0
      %p34 = por %p32, %p33
      %p35 = scmp.ne.s32.totalorder %s24, %s27
      %p36 = scmp.eq.s32.totalorder %s19, 3
      %p37 = por %p35, %p36
      %p38 = scmp.ne.s32.totalorder %s27, %s28
      %p39 = scmp.eq.s32.totalorder %s19, 0
      %p40 = por %p38, %p39
      %p41 = scmp.ne.s32.totalorder %s27, %s28
      %p42 = scmp.eq.s32.totalorder %s20, 3
      %p43 = por %p41, %p42
      %p45 = scmp.ne.s32.totalorder %s28, %s44
      %p46 = scmp.eq.s32.totalorder %s20, 0
      %p47 = por %p45, %p46
      %s48 = ssub.s32 %s14, %s21
      %p49 = scmp.eq.s32.totalorder %s48, 0
      %s51 = sadd.s32 %s50, 1
      %s52 = scalar_select %p49, %s50, %s51
      %p55 = pneg %p49
      %p56 = scmp.eq.s32.totalorder %s14, 3
      %p57 = por %p55, %p56
      %p58 = scmp.ne.s32.totalorder %s50, %s53
      %p59 = scmp.eq.s32.totalorder %s14, 0
      %p60 = por %p58, %p59
      %p61 = scmp.ne.s32.totalorder %s50, %s53
      %p62 = scmp.eq.s32.totalorder %s19, 3
      %p63 = por %p61, %p62
      %p64 = scmp.ne.s32.totalorder %s53, %s54
      %p65 = scmp.eq.s32.totalorder %s19, 0
      %p66 = por %p64, %p65
      %p67 = scmp.ne.s32.totalorder %s53, %s54
      %p68 = scmp.eq.s32.totalorder %s20, 3
      %p69 = por %p67, %p68
      %p71 = scmp.ne.s32.totalorder %s54, %s70
      %p72 = scmp.eq.s32.totalorder %s20, 0
      %p73 = por %p71, %p72
      %s74 = ssub.s32 %s14, %s21
      %p75 = scmp.eq.s32.totalorder %s74, 0
      %s77 = sadd.s32 %s76, 1
      %s78 = scalar_select %p75, %s76, %s77
      %p81 = pneg %p75
      %p82 = scmp.eq.s32.totalorder %s14, 3
      %p83 = por %p81, %p82
      %p84 = scmp.ne.s32.totalorder %s76, %s79
      %p85 = scmp.eq.s32.totalorder %s14, 0
      %p86 = por %p84, %p85
      %p87 = scmp.ne.s32.totalorder %s76, %s79
      %p88 = scmp.eq.s32.totalorder %s19, 3
      %p89 = por %p87, %p88
      %p90 = scmp.ne.s32.totalorder %s79, %s80
      %p91 = scmp.eq.s32.totalorder %s19, 0
      %p92 = por %p90, %p91
      %p93 = scmp.ne.s32.totalorder %s79, %s80
      %p94 = scmp.eq.s32.totalorder %s20, 3
      %p95 = por %p93, %p94
      %p97 = scmp.ne.s32.totalorder %s80, %s96
      %p98 = scmp.eq.s32.totalorder %s20, 0
      %p99 = por %p97, %p98
      %p100 = scmp.le.s32.totalorder 1, %s14
      %p101 = scmp.lt.s32.totalorder %s14, 5
      %p102 = pnand %p100, %p101
      %p103 = pneg %p102
      // Predicated region
      $region9: #{tpu_custom_call.1} parent=5 // pred_check
        _
      $region10: #{tpu_custom_call.1} parent=5 // pred_check_branch
        %105 = sbr.rel (%p102) target = $region12
      $region11: #{tpu_custom_call.1} parent=5 // pred_region
        %s106 = ssub.s32 %s14, 1
      $region12: #{tpu_custom_call.1} parent=5 // pred_fallthru
        _
      %p107 = scmp.lt.s32.totalorder %s14, 4
      // Predicated region
      $region13: #{tpu_custom_call.1} parent=5 // pred_check
        %p108 = pneg %p107
      $region14: #{tpu_custom_call.1} parent=5 // pred_check_branch
        %110 = sbr.rel (%p108) target = $region16
      $region15: #{tpu_custom_call.1} parent=5 // pred_region
        // Predicated region
        $region17: #{tpu_custom_call.1} parent=15 // pred_check
          %p111 = pneg %p34
        $region18: #{tpu_custom_call.1} parent=15 // pred_check_branch
          %113 = sbr.rel (%p111) target = $region20
        $region19: #{tpu_custom_call.1} parent=15 // pred_region
          %s114 = sand.u32 %s24, 1
          %s115 = scalar_lea.sflag [#allocation3], %s114
          %s116 = sand.u32 %s24, 1
          %s117 = smul.addr %s116, 16
          %s118 = scalar_lea.vmem [#allocation2], %s117
          %120 = vsyncadd %s115, 0
          %s121 = smul.addr %s14, 8
          %s122 = scalar_lea.hbm %s0, %s121
          %s123 = sshll.u32 %s122, 4
          %s124 = int_to_ptr.hbm [resolvable:$true] %s123
          %s125 = sshll.u32 %s118, 4
          %s126 = int_to_ptr.vmem [resolvable:$true] %s125
          %131 = dma.hbm_to_vmem [thread:$0]  %s124, 256, %s126, %s115, 512, 128, 8
        $region20: #{tpu_custom_call.1} parent=15 // pred_fallthru
          _
        // Predicated region
        $region21: #{tpu_custom_call.1} parent=15 // pred_check
          %p132 = pneg %p60
        $region22: #{tpu_custom_call.1} parent=15 // pred_check_branch
          %134 = sbr.rel (%p132) target = $region24
        $region23: #{tpu_custom_call.1} parent=15 // pred_region
          %p135 = scmp.lt.s32.totalorder %s14, 3
          %s136 = scalar_select %p135, %s14, 3
          %s137 = smul.addr %s136, 8
          %s138 = scalar_lea.vmem %s1, %s137
        $region24: #{tpu_custom_call.1} parent=15 // pred_fallthru
          _
      $region16: #{tpu_custom_call.1} parent=5 // pred_fallthru
        _
      %p139 = scmp.le.s32.totalorder 1, %s14
      %p140 = scmp.lt.s32.totalorder %s14, 5
      %p141 = pnand %p139, %p140
      %p142 = pneg %p141
      // Predicated region
      $region25: #{tpu_custom_call.1} parent=5 // pred_check
        _
      $region26: #{tpu_custom_call.1} parent=5 // pred_check_branch
        %144 = sbr.rel (%p141) target = $region28
      $region27: #{tpu_custom_call.1} parent=5 // pred_region
        %s145 = ssub.s32 %s14, 1
        %s146 = sand.u32 %s27, 1
        %s147 = scalar_lea.sflag [#allocation3], %s146
        %s148 = sand.u32 %s27, 1
        %s149 = smul.addr %s148, 16
        %s150 = scalar_lea.vmem [#allocation2], %s149
        // Predicated region
        $region29: #{tpu_custom_call.1} parent=27 // pred_check
          %p151 = pneg %p40
        $region30: #{tpu_custom_call.1} parent=27 // pred_check_branch
          %153 = sbr.rel (%p151) target = $region32
        $region31: #{tpu_custom_call.1} parent=27 // pred_region
          %155 = dma.done %s147, 256
        $region32: #{tpu_custom_call.1} parent=27 // pred_fallthru
          _
        %s156 = sand.u32 %s27, 1
        %s157 = scalar_lea.sflag [#allocation3], %s156
        %s158 = sand.u32 %s27, 1
        %s159 = smul.addr %s158, 16
        %s160 = scalar_lea.vmem [#allocation2], %s159
        %p161 = pneg %p40
        %p162 = pneg %p37
        %p163 = scmp.lt.s32.totalorder %s19, 3
        %s164 = scalar_select %p163, %s19, 3
        %s165 = smul.addr %s164, 8
        %s166 = scalar_lea.vmem %s1, %s165
        %p167 = pneg %p66
        %p168 = pneg %p63
        %p169 = pneg %p92
        %p170 = pneg %p89
        %s171 = sand.u32 %s79, 1
        %s172 = scalar_lea.sflag [#allocation4], %s171
        %s173 = sand.u32 %s79, 1
        %s174 = smul.addr %s173, 16
        %s175 = scalar_lea.vmem [#allocation5], %s174
        %p176 = scmp.lt.s32.totalorder %s19, 3
        %s177 = scalar_select %p176, %s19, 3
        %s178 = smul.addr %s177, 8
        %s179 = scalar_lea.vmem %s1, %s178
        %v180 = vld [vmem:[%s150] sm:$0xff]
        %v181 = vld [vmem:[%s150 + $0x8] sm:$0xff]
        %v182 = vld [vmem:[%s179] sm:$0xff]
        %v183 = vlaneseq
        %v184 = vand.u32 %v183, 127
        %vm185 = vcmp.gt.s32.totalorder %v184, 0
        %v186 = vsel %vm185, 1, 0
        %v187 = vcvt.s32.f32 %v186
        %vm188 = vcmp.lt.s32.totalorder %v184, 127
        %v189 = vsel %vm188, 1, 0
        %v190 = vcvt.s32.f32 %v189
        %192 = vset.pattern.permute.xlu0 1
        %193 = vperm.xlu0 %192, %v182
        %v194 = vpop.permute.xlu0 %193
        %v196 = vmul.f32 %v180, %v194
        %v197 = vmul.f32 %v181, %v194
        %198 = vrot.lane.b32.xlu0 %v180, 1
        %v199 = vpop.permute.xlu0 %198
        %200 = vrot.lane.b32.xlu0 %v181, 1
        %v201 = vpop.permute.xlu0 %200
        %v202 = vmul.f32 %v199, %v187
        %v203 = vmul.f32 %v201, %v187
        %204 = vset.pattern.permute.xlu0 0
        %205 = vperm.xlu0 %204, %v182
        %v206 = vpop.permute.xlu0 %205
        %v208 = vmul.f32 %v202, %v206
        %v209 = vmul.f32 %v203, %v206
        %v210 = vadd.f32 %v196, %v208
        %v211 = vadd.f32 %v197, %v209
        %212 = vrot.lane.b32.xlu0 %v180, 127
        %v213 = vpop.permute.xlu0 %212
        %214 = vrot.lane.b32.xlu0 %v181, 127
        %v215 = vpop.permute.xlu0 %214
        %v216 = vmul.f32 %v213, %v190
        %v217 = vmul.f32 %v215, %v190
        %218 = vset.pattern.permute.xlu0 2
        %219 = vperm.xlu0 %218, %v182
        %v220 = vpop.permute.xlu0 %219
        %v222 = vmul.f32 %v216, %v220
        %v223 = vmul.f32 %v217, %v220
        %v224 = vadd.f32 %v210, %v222
        %v225 = vadd.f32 %v211, %v223
        %v226 = vmax.f32 %v224, 0.0
        %v227 = vmax.f32 %v225, 0.0
        %228 = vadd.xlane.f32.xlu0 %v226
        %v229 = vpop.xlane.xlu0 %228
        %230 = vadd.xlane.f32.xlu0 %v227
        %v231 = vpop.xlane.xlu0 %230
        %v232 = vadd.f32 %v229, %v231
        %v233 = vrcp.pop 256.0
        %v234 = vmul.f32 256.0, %v233
        %v235 = vsub.f32 1.0, %v234
        %v236 = vmul.f32 %v233, %v235
        %v237 = vadd.f32 %v233, %v236
        %vm238 = vweird.f32 %v233
        %v239 = vsel %vm238, %v233, %v237
        %v240 = vmul.f32 %v232, %v239
        %v241 = vsub.f32 %v226, %v240
        %v242 = vsub.f32 %v227, %v240
        %v243 = vmul.f32 %v241, %v241
        %v244 = vmul.f32 %v242, %v242
        %245 = vadd.xlane.f32.xlu0 %v243
        %v246 = vpop.xlane.xlu0 %245
        %247 = vadd.xlane.f32.xlu0 %v244
        %v248 = vpop.xlane.xlu0 %247
        %v249 = vadd.f32 %v246, %v248
        %v250 = vmul.f32 %v249, %v239
        %v251 = vadd.f32 %v250, 1e-05
        %v252 = vrsqrt.pop %v251
        %v253 = vmul.f32 %v252, %v251
        %v254 = vmul.f32 %v253, %v252
        %v255 = vmul.f32 0.5, %v254
        %v256 = vsub.f32 1.5, %v255
        %v257 = vmul.f32 %v252, %v256
        %vm258 = vweird.f32 %v251
        %vm259 = vweird.f32 %v252
        %vm260 = vmor %vm258, %vm259
        %v261 = vsel %vm260, %v252, %v257
        %v262 = vmul.f32 %v241, %v261
        %v263 = vmul.f32 %v242, %v261
        %264 = vst [vmem:[%s175] sm:$0xff] %v262
        %265 = vst [vmem:[%s175 + $0x8] sm:$0xff] %v263
        %s266 = sand.u32 %s79, 1
        %s267 = scalar_lea.sflag [#allocation4], %s266
        %s268 = sand.u32 %s79, 1
        %s269 = smul.addr %s268, 16
        %s270 = scalar_lea.vmem [#allocation5], %s269
        // Predicated region
        $region33: #{tpu_custom_call.1} parent=27 // pred_check
          %p271 = pneg %p89
        $region34: #{tpu_custom_call.1} parent=27 // pred_check_branch
          %273 = sbr.rel (%p271) target = $region36
        $region35: #{tpu_custom_call.1} parent=27 // pred_region
          %275 = vsyncadd %s267, 0
          %s276 = smul.addr %s19, 8
          %s277 = scalar_lea.hbm %s2, %s276
          %s278 = sshll.u32 %s270, 4
          %s279 = int_to_ptr.vmem [resolvable:$true] %s278
          %s280 = sshll.u32 %s277, 4
          %s281 = int_to_ptr.hbm [resolvable:$true] %s280
          %286 = dma.vmem_to_hbm [thread:$0]  %s279, 256, %s281, %s267, 128, 512, 8
        $region36: #{tpu_custom_call.1} parent=27 // pred_fallthru
          _
      $region28: #{tpu_custom_call.1} parent=5 // pred_fallthru
        _
      %p287 = scmp.le.s32.totalorder 2, %s14
      // Predicated region
      $region37: #{tpu_custom_call.1} parent=5 // pred_check
        %p288 = pneg %p287
      $region38: #{tpu_custom_call.1} parent=5 // pred_check_branch
        %290 = sbr.rel (%p288) target = $region40
      $region39: #{tpu_custom_call.1} parent=5 // pred_region
        %s291 = ssub.s32 %s14, 2
        // Predicated region
        $region41: #{tpu_custom_call.1} parent=39 // pred_check
          %p292 = pneg %p95
        $region42: #{tpu_custom_call.1} parent=39 // pred_check_branch
          %294 = sbr.rel (%p292) target = $region44
        $region43: #{tpu_custom_call.1} parent=39 // pred_region
          %s295 = sand.u32 %s80, 1
          %s296 = scalar_lea.sflag [#allocation4], %s295
          %s297 = sand.u32 %s80, 1
          %s298 = smul.addr %s297, 16
          %s299 = scalar_lea.vmem [#allocation5], %s298
          %301 = dma.done %s296, 256
        $region44: #{tpu_custom_call.1} parent=39 // pred_fallthru
          _
      $region40: #{tpu_custom_call.1} parent=5 // pred_fallthru
        _
    $region6: #{tpu_custom_call.1} parent=1 // loop_footer
      %s18 = sadd.s32 1, %s14
    $region7: #{tpu_custom_call.1} parent=1 // loop_footer_branch
      %13 = sbr.rel target = $region3
    $region8: #{tpu_custom_call.1} parent=1 // loop_exit
      _
    %302 = vsyncpa [#allocation3], 1
    %s303 = scalar_lea.sflag [#allocation3], 1
    %304 = vsyncpa %s303, 1
    %305 = vsyncpa [#allocation4], 1
    %s306 = scalar_lea.sflag [#allocation4], 1
    %307 = vsyncpa %s306, 1

</llo_original>
